<compile_context>
chip_gen: v6e
topology: v6e:2x2x1
jax: 0.10.0
libtpu: 0.0.40
codegen_flags: <defaults>
</compile_context>

<pallas_src>
import math
import functools

import jax
import jax.numpy as jnp
from jax import lax
from jax.experimental import pallas as pl
from jax.experimental.pallas import tpu as pltpu


def make_pe_table(d_model, max_len=5000, dtype=jnp.float32):
    """Deterministic sinusoidal table, identical math to the PyTorch __init__."""
    position = jnp.arange(0, max_len, dtype=jnp.float32)[:, None]            # (L, 1)
    div_term = jnp.exp(
        jnp.arange(0, d_model, 2, dtype=jnp.float32)
        * (-math.log(10000.0) / d_model)
    )                                                                        # (D/2,)
    pe = jnp.zeros((max_len, d_model), dtype=jnp.float32)
    pe = pe.at[:, 0::2].set(jnp.sin(position * div_term))
    pe = pe.at[:, 1::2].set(jnp.cos(position * div_term))
    return pe.astype(dtype)                                                  # (L, D)


# ----------------------------------------------------------------------------
# Kernels
# ----------------------------------------------------------------------------
def _pe_add_kernel(x_ref, pe_ref, o_ref, *, batch, d, slice_bcast):
    """Eval-mode kernel: out = x + pe (pe broadcast over batch along lanes)."""
    pe_t = pe_ref[...]                          # (tile_s, D)
    if batch == 1:
        o_ref[...] = x_ref[...] + pe_t
    elif slice_bcast:
        # Per-batch static-slice adds: no block-sized broadcast temporary,
        # one vld + one vst per output vreg.
        for b in range(batch):
            sl = slice(b * d, (b + 1) * d)
            o_ref[:, sl] = x_ref[:, sl] + pe_t
    else:
        # D not lane-aligned: a single tiled broadcast avoids per-slice
        # lane-shift work.
        o_ref[...] = x_ref[...] + jnp.tile(pe_t, (1, batch))


def _pe_add_dropout_kernel(x_ref, pe_ref, r_ref, o_ref, *,
                           batch, d, slice_bcast, threshold_s32, scale):
    """Training-mode kernel: out = dropout(x + pe, p).

    r_ref holds uniform int32 bits (full 32-bit resolution); keep iff
    bits >= threshold where P(bits < threshold) = p.
    """
    pe_t = pe_ref[...]                          # (tile_s, D)
    thr = jnp.int32(threshold_s32)

    def _apply(x_blk, pe_blk, r_blk):
        y = x_blk + pe_blk
        keep = r_blk >= thr
        return jnp.where(keep, y * jnp.asarray(scale, y.dtype),
                         jnp.zeros_like(y))

    if batch == 1:
        o_ref[...] = _apply(x_ref[...], pe_t, r_ref[...])
    elif slice_bcast:
        for b in range(batch):
            sl = slice(b * d, (b + 1) * d)
            o_ref[:, sl] = _apply(x_ref[:, sl], pe_t, r_ref[:, sl])
    else:
        o_ref[...] = _apply(x_ref[...], jnp.tile(pe_t, (1, batch)), r_ref[...])


# ----------------------------------------------------------------------------
# Tiling / VMEM heuristics
# ----------------------------------------------------------------------------
def _pick_tile_s(S, row_bytes, itemsize, target_block_bytes, min_grid=4):
    """Sequence tile: ~target bytes per x block, but keep >= min_grid grid steps
    (pipelining + dual-TC sharding) and round to the dtype packing multiple."""
    pack = max(8, 32 // max(itemsize, 1))       # 8 f32, 16 bf16, 32 int8/fp8
    t = target_block_bytes // max(row_bytes, 1)
    t = min(t, pl.cdiv(S, min_grid))            # never collapse to grid=(1,)
    t = max(pack, (t // pack) * pack)
    if t >= S:
        return S                                # full extent is always legal
    return int(t)


def _vmem_cap_bytes():
    """Generation-aware scoped-VMEM cap (guarded: works off-TPU too)."""
    try:
        info = pltpu.get_tpu_info()
        cap = int(info.vmem_capacity_bytes)
        # Leave headroom for compiler-internal scratch; matters most on v7x
        # (64 MiB physical VMEM per core).
        return max(16 << 20, min((cap * 5) // 8, 80 << 20))
    except Exception:
        return 48 << 20


# ----------------------------------------------------------------------------
# Wrapper
# ----------------------------------------------------------------------------
def builtin_positional_encoding(x, pe, *, p=0.1, training=False, seed=0,
                                tile_s=None, target_block_bytes=None):
    """x: [S, B, D] float array.  pe: [max_len, D].  Returns [S, B, D]."""
    S, B, D = x.shape
    assert pe.shape[0] >= S and pe.shape[1] == D

    # Match dtypes up front (no-op if already equal) -> no in-kernel upcasts.
    pe = pe.astype(x.dtype)

    # Lane-dense 2-D view of x: free contiguous reshape, no data movement.
    # TODO(synk): if B*D < 128 every store is a masked partial vst; a dedicated
    # small-model layout is not implemented (inputs that small are latency-trivial).
    x2 = x.reshape(S, B * D)

    itemsize = jnp.dtype(x.dtype).itemsize
    row_bytes = B * D * itemsize

    train_dropout = bool(training) and p > 0.0
    if train_dropout and p >= 1.0:
        # torch.nn.Dropout(p=1.0) zeroes everything.
        return jnp.zeros_like(x)

    if target_block_bytes is None:
        # Smaller blocks in training: the int32 mask stream + temporaries count.
        target_block_bytes = (2 << 20) if train_dropout else (4 << 20)
    if tile_s is None:
        tile_s = _pick_tile_s(S, row_bytes, itemsize, target_block_bytes)
    grid = (pl.cdiv(S, tile_s),)                # ragged last block is masked

    slice_bcast = (D % 128 == 0)                # lane-aligned per-batch slices

    x_spec = pl.BlockSpec((tile_s, B * D), lambda i, *_: (i, 0))
    pe_spec = pl.BlockSpec((tile_s, D), lambda i, *_: (i, 0))
    out_spec = pl.BlockSpec((tile_s, B * D), lambda i, *_: (i, 0))
    out_shape = jax.ShapeDtypeStruct((S, B * D), x.dtype)

    # VMEM budget: double-buffered x / out / pe (+ mask) blocks, plus an
    # allowance for in-kernel temporaries (y / keep / where results).
    blk_bytes = tile_s * row_bytes
    pe_blk_bytes = tile_s * D * itemsize
    r_blk_bytes = tile_s * B * D * 4 if train_dropout else 0
    vmem_need = (2 * (2 * blk_bytes + pe_blk_bytes + r_blk_bytes)
                 + 2 * blk_bytes + r_blk_bytes + (2 << 20))
    vmem_limit = int(min(max(vmem_need, 16 << 20), _vmem_cap_bytes()))

    compiler_params = pltpu.CompilerParams(
        dimension_semantics=("parallel",),      # lets v7x shard tiles across TCs
        vmem_limit_bytes=vmem_limit,
    )

    n_elem = S * B * D

    if not train_dropout:
        cost = pl.CostEstimate(
            flops=n_elem, transcendentals=0,
            bytes_accessed=(2 * n_elem + S * D) * itemsize)
        kernel = functools.partial(_pe_add_kernel,
                                   batch=B, d=D, slice_bcast=slice_bcast)
        out2 = pl.pallas_call(
            kernel,
            out_shape=out_shape,
            grid_spec=pltpu.PrefetchScalarGridSpec(
                num_scalar_prefetch=0,
                grid=grid,
                in_specs=[x_spec, pe_spec],
                out_specs=out_spec,
            ),
            compiler_params=compiler_params,
            cost_estimate=cost,
        )(x2, pe)
        return out2.reshape(S, B, D)

    # ---- training-mode dropout ------------------------------------------
    # TODO(synk): dropout bits come from jax.random in the wrapper (portable to
    # CPU/interpret lowering); the on-chip pltpu PRNG would save the extra
    # S*B*D*4 bytes of HBM read but has no CPU lowering, and neither stream can
    # bit-match torch.nn.Dropout's RNG (distribution/semantics match).
    t_u32 = min(int(round(p * float(2 ** 32))), 2 ** 32 - 1)
    threshold_s32 = t_u32 - 2 ** 31             # keep iff s32 bits >= threshold
    scale = 1.0 / (1.0 - p)

    key = jax.random.PRNGKey(seed)
    rbits = lax.bitcast_convert_type(
        jax.random.bits(key, (S, B * D), dtype=jnp.uint32), jnp.int32)
    r_spec = pl.BlockSpec((tile_s, B * D), lambda i, *_: (i, 0))

    cost = pl.CostEstimate(
        flops=3 * n_elem, transcendentals=0,
        bytes_accessed=(2 * n_elem + S * D) * itemsize + n_elem * 4)
    kernel = functools.partial(_pe_add_dropout_kernel,
                               batch=B, d=D, slice_bcast=slice_bcast,
                               threshold_s32=threshold_s32, scale=scale)
    out2 = pl.pallas_call(
        kernel,
        out_shape=out_shape,
        grid_spec=pltpu.PrefetchScalarGridSpec(
            num_scalar_prefetch=0,
            grid=grid,
            in_specs=[x_spec, pe_spec, r_spec],
            out_specs=out_spec,
        ),
        compiler_params=compiler_params,
        cost_estimate=cost,
    )(x2, pe, rbits)
    return out2.reshape(S, B, D)


if __name__ == "__main__":
    # Small shapes consistent with the forward signature: x [S, B, D]
    S, B, D = 16, 2, 32
    MAX_LEN = 64

    key = jax.random.PRNGKey(0)
    x = jax.random.normal(key, (S, B, D), dtype=jnp.float32)
    pe = make_pe_table(D, max_len=MAX_LEN, dtype=jnp.float32)

    ref = x + pe[:S][:, None, :]

    # Eval mode (dropout is identity) -> deterministic, checked against ref.
    out = builtin_positional_encoding(x, pe, p=0.1, training=False)
    out = jax.block_until_ready(out)
    assert out.shape == (S, B, D)
    assert jnp.allclose(out, ref, atol=1e-6), "eval-mode mismatch vs. reference"

    # Training mode: every kept element must equal (x + pe) / (1 - p),
    # dropped elements are exactly zero.
    p = 0.1
    out_tr = builtin_positional_encoding(x, pe, p=p, training=True, seed=123)
    out_tr = jax.block_until_ready(out_tr)
    assert out_tr.shape == (S, B, D)
    kept = out_tr != 0
    assert jnp.allclose(jnp.where(kept, out_tr, 0.0),
                        jnp.where(kept, ref / (1.0 - p), 0.0),
                        atol=1e-5, rtol=1e-5), "training-mode mismatch"

    print("KERNEL_OK")
</pallas_src>

<mosaic_0001>
module attributes {stable_mosaic.version = 11 : i64} {
  func.func @_pe_add_kernel(%arg0: i32, %arg1: memref<8x64xf32, #tpu.memory_space<vmem>>, %arg2: memref<8x32xf32, #tpu.memory_space<vmem>>, %arg3: memref<8x64xf32, #tpu.memory_space<vmem>>) attributes {dimension_semantics = [#tpu.dimension_semantics<parallel>], iteration_bounds = array<i64: 2>, scalar_prefetch = 0 : i64, scratch_operands = 0 : i64, tpu.core_type = #tpu.core_type<tc>, window_params = [{transform_indices = @transform_0, window_bounds = array<i64: 8, 64>}, {transform_indices = @transform_1, window_bounds = array<i64: 8, 32>}, {transform_indices = @transform_2, window_bounds = array<i64: 8, 64>}]} {
    %c0 = arith.constant 0 : index
    %c0_0 = arith.constant 0 : index
    %0 = vector.load %arg2[%c0, %c0_0] : memref<8x32xf32, #tpu.memory_space<vmem>>, vector<8x32xf32>
    %c0_1 = arith.constant 0 : index
    %c0_2 = arith.constant 0 : index
    %1 = vector.load %arg1[%c0_1, %c0_2] : memref<8x64xf32, #tpu.memory_space<vmem>>, vector<8x64xf32>
    %2 = tpu.concatenate %0, %0 in 1 : vector<8x32xf32>, vector<8x32xf32> -> vector<8x64xf32>
    %3 = arith.addf %1, %2 : vector<8x64xf32>
    %c0_3 = arith.constant 0 : index
    %c0_4 = arith.constant 0 : index
    %4 = vector.load %arg3[%c0_3, %c0_4] : memref<8x64xf32, #tpu.memory_space<vmem>>, vector<8x64xf32>
    tpu.vector_store %arg3[%c0_3, %c0_4], %3 {strides = array<i32>} : memref<8x64xf32, #tpu.memory_space<vmem>>, vector<8x64xf32>,
    return
  }
  func.func @transform_0(%arg0: i32) -> (i32, i32) {
    %c0_i32 = arith.constant 0 : i32
    %c0_i32_0 = arith.constant 0 : i32
    return %arg0, %c0_i32 : i32, i32
  }
  func.func @transform_1(%arg0: i32) -> (i32, i32) {
    %c0_i32 = arith.constant 0 : i32
    %c0_i32_0 = arith.constant 0 : i32
    return %arg0, %c0_i32 : i32, i32
  }
  func.func @transform_2(%arg0: i32) -> (i32, i32) {
    %c0_i32 = arith.constant 0 : i32
    %c0_i32_0 = arith.constant 0 : i32
    return %arg0, %c0_i32 : i32, i32
  }
}

</mosaic_0001>

<llo_original>
// kernel: tpu_custom_call.1
$region0: #{tpu_custom_call.1}
  #allocation0 [shape = 'u32[]', space=smem, size = 0x4, offset = 0x4, fixed_abs, tag = 'smem constant byte address 0x4 - core index']
  #allocation1 [shape = 'u32[144,128]{1,0:T(1,128)}', space=vmem, size = 0x12000, scoped, tag = 'internal scratch']
  %s0 = inlined_call_operand.vmem [shape: f32[16,64], index: 0, kind: input, shape index: {}]
  %s1 = inlined_call_operand.vmem [shape: f32[64,32], index: 1, kind: input, shape index: {}]
  %s2 = inlined_call_operand.hbm [shape: f32[16,64], index: 2, kind: output, shape index: {}]
  %s3 = sld [smem:[#allocation0]]
  $region41: #{tpu_custom_call.1} parent=0
    _
  %s5 = ssub.s32 1, %s3
  %s6 = scalar_select 0, %s5, %s3
  $region1: #{tpu_custom_call.1} parent=0
    #allocation2 [shape = 'u8[8192]{0}', space=vmem, size = 0x2000, scoped, tag = 'output window, operand 0']
    #allocation3 [shape = 's32[2]{0}', space=sflag, size = 0x8, scoped, tag = 'scoped memory for tpu_custom_call.1']
    %7 = vsyncpa [#allocation3], 0
    %s8 = scalar_lea.sflag [#allocation3], 1
    %9 = vsyncpa %s8, 0
    loop: start=0, step=1, limit=4
    $region2: #{tpu_custom_call.1} parent=1 // loop_pre_header
      _
    $region3: #{tpu_custom_call.1} parent=1 // loop_header
      %s11 = sphi 0, %s15
      %p12 = scmp.ge.s32.totalorder %s11, 4
      %s21 = sphi 0, %s23
      %s24 = sphi 0, %s21
      %s25 = sphi 0, %s24
      %s41 = sphi 0, %s25
      %s47 = sphi 0, %s49
      %s50 = sphi 0, %s47
      %s51 = sphi 0, %s50
      %s67 = sphi 0, %s51
      %s73 = sphi 0, %s75
      %s76 = sphi 0, %s73
      %s77 = sphi 0, %s76
      %s93 = sphi 0, %s77
    $region4: #{tpu_custom_call.1} parent=1 // loop_header_branch
      %14 = sbr.rel (%p12) target = $region8
    $region5: #{tpu_custom_call.1} parent=1 // loop_body
      %s16 = ssub.s32 %s11, 1
      %s17 = ssub.s32 %s11, 2
      %s18 = sadd.s32 %s11, 1
      %s19 = ssub.s32 %s11, %s18
      %p20 = scmp.eq.s32.totalorder %s19, 0
      %s22 = sadd.s32 %s21, 1
      %s23 = scalar_select %p20, %s21, %s22
      %p26 = pneg %p20
      %p27 = scmp.eq.s32.totalorder %s11, 1
      %p28 = por %p26, %p27
      %p29 = scmp.ne.s32.totalorder %s21, %s24
      %p30 = scmp.eq.s32.totalorder %s11, 0
      %p31 = por %p29, %p30
      %p32 = scmp.ne.s32.totalorder %s21, %s24
      %p33 = scmp.eq.s32.totalorder %s16, 1
      %p34 = por %p32, %p33
      %p35 = scmp.ne.s32.totalorder %s24, %s25
      %p36 = scmp.eq.s32.totalorder %s16, 0
      %p37 = por %p35, %p36
      %p38 = scmp.ne.s32.totalorder %s24, %s25
      %p39 = scmp.eq.s32.totalorder %s17, 1
      %p40 = por %p38, %p39
      %p42 = scmp.ne.s32.totalorder %s25, %s41
      %p43 = scmp.eq.s32.totalorder %s17, 0
      %p44 = por %p42, %p43
      %s45 = ssub.s32 %s11, %s18
      %p46 = scmp.eq.s32.totalorder %s45, 0
      %s48 = sadd.s32 %s47, 1
      %s49 = scalar_select %p46, %s47, %s48
      %p52 = pneg %p46
      %p53 = scmp.eq.s32.totalorder %s11, 1
      %p54 = por %p52, %p53
      %p55 = scmp.ne.s32.totalorder %s47, %s50
      %p56 = scmp.eq.s32.totalorder %s11, 0
      %p57 = por %p55, %p56
      %p58 = scmp.ne.s32.totalorder %s47, %s50
      %p59 = scmp.eq.s32.totalorder %s16, 1
      %p60 = por %p58, %p59
      %p61 = scmp.ne.s32.totalorder %s50, %s51
      %p62 = scmp.eq.s32.totalorder %s16, 0
      %p63 = por %p61, %p62
      %p64 = scmp.ne.s32.totalorder %s50, %s51
      %p65 = scmp.eq.s32.totalorder %s17, 1
      %p66 = por %p64, %p65
      %p68 = scmp.ne.s32.totalorder %s51, %s67
      %p69 = scmp.eq.s32.totalorder %s17, 0
      %p70 = por %p68, %p69
      %s71 = ssub.s32 %s11, %s18
      %p72 = scmp.eq.s32.totalorder %s71, 0
      %s74 = sadd.s32 %s73, 1
      %s75 = scalar_select %p72, %s73, %s74
      %p78 = pneg %p72
      %p79 = scmp.eq.s32.totalorder %s11, 1
      %p80 = por %p78, %p79
      %p81 = scmp.ne.s32.totalorder %s73, %s76
      %p82 = scmp.eq.s32.totalorder %s11, 0
      %p83 = por %p81, %p82
      %p84 = scmp.ne.s32.totalorder %s73, %s76
      %p85 = scmp.eq.s32.totalorder %s16, 1
      %p86 = por %p84, %p85
      %p87 = scmp.ne.s32.totalorder %s76, %s77
      %p88 = scmp.eq.s32.totalorder %s16, 0
      %p89 = por %p87, %p88
      %p90 = scmp.ne.s32.totalorder %s76, %s77
      %p91 = scmp.eq.s32.totalorder %s17, 1
      %p92 = por %p90, %p91
      %p94 = scmp.ne.s32.totalorder %s77, %s93
      %p95 = scmp.eq.s32.totalorder %s17, 0
      %p96 = por %p94, %p95
      %p97 = scmp.le.s32.totalorder 1, %s11
      %p98 = scmp.lt.s32.totalorder %s11, 3
      %p99 = pnand %p97, %p98
      %p100 = pneg %p99
      // Predicated region
      $region9: #{tpu_custom_call.1} parent=5 // pred_check
        _
      $region10: #{tpu_custom_call.1} parent=5 // pred_check_branch
        %102 = sbr.rel (%p99) target = $region12
      $region11: #{tpu_custom_call.1} parent=5 // pred_region
        %s103 = ssub.s32 %s11, 1
      $region12: #{tpu_custom_call.1} parent=5 // pred_fallthru
        _
      %p104 = scmp.lt.s32.totalorder %s11, 2
      // Predicated region
      $region13: #{tpu_custom_call.1} parent=5 // pred_check
        %p105 = pneg %p104
      $region14: #{tpu_custom_call.1} parent=5 // pred_check_branch
        %107 = sbr.rel (%p105) target = $region16
      $region15: #{tpu_custom_call.1} parent=5 // pred_region
        // Predicated region
        $region17: #{tpu_custom_call.1} parent=15 // pred_check
          %p108 = pneg %p31
        $region18: #{tpu_custom_call.1} parent=15 // pred_check_branch
          %110 = sbr.rel (%p108) target = $region20
        $region19: #{tpu_custom_call.1} parent=15 // pred_region
          %p111 = scmp.lt.s32.totalorder %s11, 1
          %s112 = scalar_select %p111, %s11, 1
          %s113 = smul.addr %s112, 8
          %s114 = scalar_lea.vmem %s0, %s113
        $region20: #{tpu_custom_call.1} parent=15 // pred_fallthru
          _
        // Predicated region
        $region21: #{tpu_custom_call.1} parent=15 // pred_check
          %p115 = pneg %p57
        $region22: #{tpu_custom_call.1} parent=15 // pred_check_branch
          %117 = sbr.rel (%p115) target = $region24
        $region23: #{tpu_custom_call.1} parent=15 // pred_region
          %p118 = scmp.lt.s32.totalorder %s11, 7
          %s119 = scalar_select %p118, %s11, 7
          %s120 = smul.addr %s119, 8
          %s121 = scalar_lea.vmem %s1, %s120
        $region24: #{tpu_custom_call.1} parent=15 // pred_fallthru
          _
      $region16: #{tpu_custom_call.1} parent=5 // pred_fallthru
        _
      %p122 = scmp.le.s32.totalorder 1, %s11
      %p123 = scmp.lt.s32.totalorder %s11, 3
      %p124 = pnand %p122, %p123
      %p125 = pneg %p124
      // Predicated region
      $region25: #{tpu_custom_call.1} parent=5 // pred_check
        _
      $region26: #{tpu_custom_call.1} parent=5 // pred_check_branch
        %127 = sbr.rel (%p124) target = $region28
      $region27: #{tpu_custom_call.1} parent=5 // pred_region
        %s128 = ssub.s32 %s11, 1
        %p129 = scmp.lt.s32.totalorder %s16, 1
        %s130 = scalar_select %p129, %s16, 1
        %s131 = smul.addr %s130, 8
        %s132 = scalar_lea.vmem %s0, %s131
        %p133 = pneg %p37
        %p134 = pneg %p34
        %p135 = scmp.lt.s32.totalorder %s16, 7
        %s136 = scalar_select %p135, %s16, 7
        %s137 = smul.addr %s136, 8
        %s138 = scalar_lea.vmem %s1, %s137
        %p139 = pneg %p63
        %p140 = pneg %p60
        %p141 = pneg %p89
        %p142 = pneg %p86
        %s143 = sand.u32 %s76, 1
        %s144 = scalar_lea.sflag [#allocation3], %s143
        %s145 = sand.u32 %s76, 1
        %s146 = smul.addr %s145, 8
        %s147 = scalar_lea.vmem [#allocation2], %s146
        %p148 = scmp.lt.s32.totalorder %s16, 1
        %s149 = scalar_select %p148, %s16, 1
        %s150 = smul.addr %s149, 8
        %s151 = scalar_lea.vmem %s0, %s150
        %p152 = scmp.lt.s32.totalorder %s16, 7
        %s153 = scalar_select %p152, %s16, 7
        %s154 = smul.addr %s153, 8
        %s155 = scalar_lea.vmem %s1, %s154
        %v156 = vld [vmem:[%s155] sm:$0xff]
        %v157 = vld [vmem:[%s151] sm:$0xff]
        %159 = vrot.lane.b32.xlu0 %v156, 32
        %v160 = vpop.permute.xlu0 %159
        %vm162 = vcmask 261120
        %v163 = vsel %vm162, %v156, %v160
        %v164 = vadd.f32 %v157, %v163
        %vm165 = vcmask 523264
        %166 = vst.msk [vmem:[%s147] sm:$0xff] %vm165, %v164
        %s167 = sand.u32 %s76, 1
        %s168 = scalar_lea.sflag [#allocation3], %s167
        %s169 = sand.u32 %s76, 1
        %s170 = smul.addr %s169, 8
        %s171 = scalar_lea.vmem [#allocation2], %s170
        // Predicated region
        $region29: #{tpu_custom_call.1} parent=27 // pred_check
          %p172 = pneg %p86
        $region30: #{tpu_custom_call.1} parent=27 // pred_check_branch
          %174 = sbr.rel (%p172) target = $region32
        $region31: #{tpu_custom_call.1} parent=27 // pred_region
          %s176 = ssub.s32 128, 128
          %177 = vsyncadd %s168, %s176
          %s178 = smul.addr %s16, 128
          %s179 = scalar_lea.hbm %s2, %s178
          %s181 = sshll.u32 %s171, 4
          %s182 = int_to_ptr.vmem [resolvable:$true] %s181
          %184 = dma.vmem_to_hbm [thread:$0]  %s182, 128, %s179, %s168
        $region32: #{tpu_custom_call.1} parent=27 // pred_fallthru
          _
      $region28: #{tpu_custom_call.1} parent=5 // pred_fallthru
        _
      %p185 = scmp.le.s32.totalorder 2, %s11
      // Predicated region
      $region33: #{tpu_custom_call.1} parent=5 // pred_check
        %p186 = pneg %p185
      $region34: #{tpu_custom_call.1} parent=5 // pred_check_branch
        %188 = sbr.rel (%p186) target = $region36
      $region35: #{tpu_custom_call.1} parent=5 // pred_region
        %s189 = ssub.s32 %s11, 2
        // Predicated region
        $region37: #{tpu_custom_call.1} parent=35 // pred_check
          %p190 = pneg %p92
        $region38: #{tpu_custom_call.1} parent=35 // pred_check_branch
          %192 = sbr.rel (%p190) target = $region40
        $region39: #{tpu_custom_call.1} parent=35 // pred_region
          %s193 = sand.u32 %s77, 1
          %s194 = scalar_lea.sflag [#allocation3], %s193
          %s195 = sand.u32 %s77, 1
          %s196 = smul.addr %s195, 8
          %s197 = scalar_lea.vmem [#allocation2], %s196
          %198 = dma.done %s194, 128
        $region40: #{tpu_custom_call.1} parent=35 // pred_fallthru
          _
      $region36: #{tpu_custom_call.1} parent=5 // pred_fallthru
        _
    $region6: #{tpu_custom_call.1} parent=1 // loop_footer
      %s15 = sadd.s32 1, %s11
    $region7: #{tpu_custom_call.1} parent=1 // loop_footer_branch
      %10 = sbr.rel target = $region3
    $region8: #{tpu_custom_call.1} parent=1 // loop_exit
      _
    %199 = vsyncpa [#allocation3], 1
    %s200 = scalar_lea.sflag [#allocation3], 1
    %201 = vsyncpa %s200, 1

</llo_original>
